<compile_context>
chip_gen: v7x
topology: tpu7x:2x2x1
jax: 0.10.0
libtpu: 0.0.40
codegen_flags: <defaults>
</compile_context>

<pallas_src>
import functools

import jax
import jax.numpy as jnp
from jax.experimental import pallas as pl
from jax.experimental.pallas import tpu as pltpu


def _round_up(x: int, m: int) -> int:
    return ((x + m - 1) // m) * m


def _vmem_budget_bytes() -> int:
    """~75% of per-core VMEM (v5e/v6e: 128 MiB -> 96 MiB, v7x: 64 MiB -> 48 MiB)."""
    try:
        cap = int(pltpu.get_tpu_info().vmem_capacity_bytes)
    except Exception:
        cap = 64 * 1024 * 1024  # conservative default (v7x per-core size)
    cap = max(32 * 1024 * 1024, min(cap, 128 * 1024 * 1024))
    return (3 * cap) // 4


# ---------------------------------------------------------------------------
# Path A: resident-weight streaming kernel (weight fits in VMEM).
# ---------------------------------------------------------------------------
def _resident_kernel(x_ref, wt_ref, b_ref, o_ref):
    # x_ref:  (TB, D)  streamed batch tile (double-buffered DMA)
    # wt_ref: (D, O)   VMEM-resident transposed weight
    # b_ref:  (1, O)   VMEM-resident f32 bias row
    # o_ref:  (TB, O)  output tile
    z = jnp.dot(x_ref[...], wt_ref[...], preferred_element_type=jnp.float32)
    z = z + b_ref[...]
    # sigmoid(z) = 1 / (1 + exp(-z)); exp runs on the EUP, reciprocal exact.
    o_ref[...] = pl.reciprocal(1.0 + jnp.exp(-z)).astype(o_ref.dtype)


# ---------------------------------------------------------------------------
# Path B: K/N-tiled kernel for large D*O (weight streamed, f32 accumulator).
# ---------------------------------------------------------------------------
def _tiled_kernel(x_ref, wt_ref, b_ref, o_ref, acc_ref, *, tk, k_rem):
    k = pl.program_id(2)
    nk = pl.num_programs(2)

    @pl.when(k == 0)
    def _():
        acc_ref[...] = jnp.zeros_like(acc_ref)

    x = x_ref[...]
    if k_rem:
        # Last K tile is ragged: zero the out-of-bounds lanes of x.  The padded
        # rows of W^T beyond D are exact zeros (padded in the wrapper), so the
        # masked product contributes exactly 0.
        col = jax.lax.broadcasted_iota(jnp.int32, x.shape, 1)
        valid = jnp.where(k == nk - 1, k_rem, tk)
        x = jnp.where(col < valid, x, jnp.zeros_like(x))

    acc_ref[...] += jnp.dot(x, wt_ref[...], preferred_element_type=jnp.float32)

    @pl.when(k == nk - 1)
    def _():
        z = acc_ref[...] + b_ref[...]
        o_ref[...] = pl.reciprocal(1.0 + jnp.exp(-z)).astype(o_ref.dtype)


# ---------------------------------------------------------------------------
# Wrapper
# ---------------------------------------------------------------------------
def torch_logistic_regression_forward(
    x,
    weight,
    bias,
    *,
    compute_dtype=None,           # e.g. jnp.bfloat16 to halve x/W^T traffic
    target_tile_bytes: int = 2 * 1024 * 1024,
    force_tiled: bool = False,
):
    """Pallas-backed equivalent of TorchLogisticRegression.forward.

    x:      (B, input_dim)
    weight: (output_dim, input_dim)   nn.Linear.weight layout
    bias:   (output_dim,)
    returns (B, output_dim) in x's original dtype
    """
    B, D = x.shape
    O = weight.shape[0]
    out_dtype = x.dtype

    if compute_dtype is not None and x.dtype != jnp.dtype(compute_dtype):
        # Opt-in lower-precision stream (costs one extra pass over x here, pays
        # off when the layer is compute-bound or x is re-read in the tiled path).
        x = x.astype(compute_dtype)
    stream_dtype = x.dtype

    itemsize = jnp.dtype(stream_dtype).itemsize
    out_itemsize = jnp.dtype(out_dtype).itemsize
    budget = _vmem_budget_bytes()

    row_in = D * itemsize
    row_out = O * out_itemsize
    b_up8 = _round_up(B, 8)

    # Resident W^T footprint (constant-index blocks are double-buffered).
    resident_bytes = 2 * (D * O * itemsize + O * 4)
    use_resident = (not force_tiled) and (
        resident_bytes + 2 * 8 * (row_in + row_out) <= budget
    )

    bias2d = bias.astype(jnp.float32).reshape(1, O)

    if use_resident:
        # One-time weight relayout (cache / jit the wrapper to avoid re-doing it).
        w_t = weight.T.astype(stream_dtype)                      # (D, O)

        # Batch tile sized for ~1-4 MiB x-stream DMAs (per-step overhead ~0.35us).
        tb = max(512, min(4096, target_tile_bytes // max(row_in, 1)))
        tb = min(tb, b_up8)
        fit = (budget - resident_bytes) // max(2 * (row_in + row_out), 1)
        tb = min(tb, max(8, fit))
        tb = max(8, (tb // 8) * 8)

        cost = pl.CostEstimate(
            flops=2 * B * D * O,
            transcendentals=B * O,
            bytes_accessed=B * D * itemsize + D * O * itemsize + B * O * out_itemsize,
        )

        return pl.pallas_call(
            _resident_kernel,
            out_shape=jax.ShapeDtypeStruct((B, O), out_dtype),
            grid=(pl.cdiv(B, tb),),
            in_specs=[
                pl.BlockSpec((tb, D), lambda i: (i, 0)),   # streamed x tile (unpadded)
                pl.BlockSpec((D, O), lambda i: (0, 0)),    # resident W^T
                pl.BlockSpec((1, O), lambda i: (0, 0)),    # resident bias
            ],
            out_specs=pl.BlockSpec((tb, O), lambda i: (i, 0)),
            compiler_params=pltpu.CompilerParams(
                dimension_semantics=("parallel",),
                vmem_limit_bytes=int(budget),
            ),
            cost_estimate=cost,
        )(x, w_t, bias2d)

    # ---------------- K/N-tiled fallback (large D*O) ----------------
    tk = D if D <= 512 else 512                    # K tile (full D if small)
    k_pad = _round_up(D, tk)
    k_rem = D % tk                                 # 0 -> no ragged K tile
    to = O if O <= 256 else 256                    # 256-wide N tiles feed the MXU
    tb = min(512, b_up8)
    tb = max(8, (tb // 8) * 8)

    w_t = weight.T.astype(stream_dtype)            # (D, O)
    if k_pad != D:
        w_t = jnp.pad(w_t, ((0, k_pad - D), (0, 0)))   # zero rows beyond D

    n_o_tiles = pl.cdiv(O, to)
    cost = pl.CostEstimate(
        flops=2 * B * D * O,
        transcendentals=B * O,
        bytes_accessed=(n_o_tiles * B * D * itemsize
                        + D * O * itemsize + B * O * out_itemsize),
    )

    kernel = functools.partial(_tiled_kernel, tk=tk, k_rem=k_rem)

    return pl.pallas_call(
        kernel,
        out_shape=jax.ShapeDtypeStruct((B, O), out_dtype),
        grid=(pl.cdiv(B, tb), n_o_tiles, k_pad // tk),
        in_specs=[
            pl.BlockSpec((tb, tk), lambda i, j, k: (i, k)),   # x tile
            pl.BlockSpec((tk, to), lambda i, j, k: (k, j)),   # W^T tile
            pl.BlockSpec((1, to), lambda i, j, k: (0, j)),    # bias tile
        ],
        out_specs=pl.BlockSpec((tb, to), lambda i, j, k: (i, j)),
        scratch_shapes=[pltpu.VMEM((tb, to), jnp.float32)],   # f32 accumulator
        compiler_params=pltpu.CompilerParams(
            dimension_semantics=("parallel", "parallel", "arbitrary"),
            vmem_limit_bytes=int(budget),
        ),
        cost_estimate=cost,
    )(x, w_t, bias2d)


if __name__ == "__main__":
    key = jax.random.PRNGKey(0)
    kx, kw, kb, kx2, kw2, kb2 = jax.random.split(key, 6)

    # --- Small case: resident-weight streaming path --------------------------
    batch, input_dim, output_dim = 8, 32, 4
    x = jax.random.normal(kx, (batch, input_dim), dtype=jnp.float32)
    bound = 1.0 / (input_dim ** 0.5)
    weight = jax.random.uniform(kw, (output_dim, input_dim), dtype=jnp.float32,
                                minval=-bound, maxval=bound)
    bias = jax.random.uniform(kb, (output_dim,), dtype=jnp.float32,
                              minval=-bound, maxval=bound)

    out = jax.block_until_ready(torch_logistic_regression_forward(x, weight, bias))
    ref = jax.nn.sigmoid(x @ weight.T + bias)
    assert out.shape == (batch, output_dim)
    assert jnp.allclose(out, ref, atol=1e-5, rtol=1e-5), float(
        jnp.max(jnp.abs(out - ref)))

    # --- Larger case: exercise the K/N-tiled fallback path -------------------
    b2, d2, o2 = 72, 640, 260
    x2 = jax.random.normal(kx2, (b2, d2), dtype=jnp.float32)
    bound2 = 1.0 / (d2 ** 0.5)
    w2 = jax.random.uniform(kw2, (o2, d2), dtype=jnp.float32,
                            minval=-bound2, maxval=bound2)
    bias2 = jax.random.uniform(kb2, (o2,), dtype=jnp.float32,
                               minval=-bound2, maxval=bound2)

    out2 = jax.block_until_ready(
        torch_logistic_regression_forward(x2, w2, bias2, force_tiled=True))
    ref2 = jax.nn.sigmoid(x2 @ w2.T + bias2)
    assert out2.shape == (b2, o2)
    assert jnp.allclose(out2, ref2, atol=2e-5, rtol=1e-5), float(
        jnp.max(jnp.abs(out2 - ref2)))

    print("KERNEL_OK")
</pallas_src>

<mosaic_0001>
module attributes {stable_mosaic.version = 11 : i64} {
  func.func @_resident_kernel(%arg0: i32, %arg1: memref<8x32xf32, #tpu.memory_space<vmem>>, %arg2: memref<32x4xf32, #tpu.memory_space<vmem>>, %arg3: memref<1x4xf32, #tpu.memory_space<vmem>>, %arg4: memref<8x4xf32, #tpu.memory_space<vmem>>) attributes {dimension_semantics = [#tpu.dimension_semantics<parallel>], iteration_bounds = array<i64: 1>, scalar_prefetch = 0 : i64, scratch_operands = 0 : i64, tpu.core_type = #tpu.core_type<tc>, window_params = [{transform_indices = @transform_0, window_bounds = array<i64: 8, 32>}, {pipeline_mode = #tpu.pipeline_mode<synchronous>, transform_indices = @transform_1, window_bounds = array<i64: 32, 4>}, {pipeline_mode = #tpu.pipeline_mode<synchronous>, transform_indices = @transform_2, window_bounds = array<i64: 1, 4>}, {transform_indices = @transform_3, window_bounds = array<i64: 8, 4>}]} {
    %c0 = arith.constant 0 : index
    %c0_0 = arith.constant 0 : index
    %0 = vector.load %arg1[%c0, %c0_0] : memref<8x32xf32, #tpu.memory_space<vmem>>, vector<8x32xf32>
    %c0_1 = arith.constant 0 : index
    %c0_2 = arith.constant 0 : index
    %1 = vector.load %arg2[%c0_1, %c0_2] : memref<32x4xf32, #tpu.memory_space<vmem>>, vector<32x4xf32>
    %cst = arith.constant dense<0.000000e+00> : vector<8x4xf32>
    %2 = tpu.matmul %0, %1, %cst {dimension_numbers = #tpu.dot_dimension_numbers<[1], [0], [0], [1], [0, 0, 1, 1], [], []>} : vector<8x32xf32>, vector<32x4xf32>, vector<8x4xf32> -> vector<8x4xf32>
    %c0_3 = arith.constant 0 : index
    %c0_4 = arith.constant 0 : index
    %3 = vector.load %arg3[%c0_3, %c0_4] : memref<1x4xf32, #tpu.memory_space<vmem>>, vector<1x4xf32>
    %4 = vector.broadcast %3 : vector<1x4xf32> to vector<8x4xf32>
    %5 = arith.addf %2, %4 : vector<8x4xf32>
    %cst_5 = arith.constant 0.000000e+00 : f32
    %6 = vector.broadcast %cst_5 : f32 to vector<8x4xf32>
    %7 = arith.subf %6, %5 : vector<8x4xf32>
    %8 = math.exp %7 : vector<8x4xf32>
    %cst_6 = arith.constant 1.000000e+00 : f32
    %9 = vector.broadcast %cst_6 : f32 to vector<8x4xf32>
    %10 = arith.addf %9, %8 : vector<8x4xf32>
    %11 = tpu.reciprocal %10 : vector<8x4xf32> -> vector<8x4xf32>
    %c0_7 = arith.constant 0 : index
    %c0_8 = arith.constant 0 : index
    %12 = vector.load %arg4[%c0_7, %c0_8] : memref<8x4xf32, #tpu.memory_space<vmem>>, vector<8x4xf32>
    tpu.vector_store %arg4[%c0_7, %c0_8], %11 {strides = array<i32>} : memref<8x4xf32, #tpu.memory_space<vmem>>, vector<8x4xf32>,
    return
  }
  func.func @transform_0(%arg0: i32) -> (i32, i32) {
    %c0_i32 = arith.constant 0 : i32
    %c0_i32_0 = arith.constant 0 : i32
    return %arg0, %c0_i32 : i32, i32
  }
  func.func @transform_1(%arg0: i32) -> (i32, i32) {
    %c0_i32 = arith.constant 0 : i32
    %c0_i32_0 = arith.constant 0 : i32
    %c0_i32_1 = arith.constant 0 : i32
    return %c0_i32, %c0_i32_0 : i32, i32
  }
  func.func @transform_2(%arg0: i32) -> (i32, i32) {
    %c0_i32 = arith.constant 0 : i32
    %c0_i32_0 = arith.constant 0 : i32
    %c0_i32_1 = arith.constant 0 : i32
    return %c0_i32, %c0_i32_0 : i32, i32
  }
  func.func @transform_3(%arg0: i32) -> (i32, i32) {
    %c0_i32 = arith.constant 0 : i32
    %c0_i32_0 = arith.constant 0 : i32
    return %arg0, %c0_i32 : i32, i32
  }
}

</mosaic_0001>

<llo_original>
// kernel: tpu_custom_call.1
$region0: #{tpu_custom_call.1}
  #allocation0 [shape = 'u32[]', space=smem, size = 0x4, offset = 0x4, fixed_abs, tag = 'smem constant byte address 0x4 - core index']
  #allocation1 [shape = 'u32[144,128]{1,0:T(1,128)}', space=vmem, size = 0x12000, scoped, tag = 'internal scratch']
  %s0 = inlined_call_operand.vmem [shape: f32[8,32], index: 0, kind: input, shape index: {}]
  %s1 = inlined_call_operand.vmem [shape: f32[32,4], index: 1, kind: input, shape index: {}]
  %s2 = inlined_call_operand.vmem [shape: f32[1,4], index: 2, kind: input, shape index: {}]
  %s3 = inlined_call_operand.vmem [shape: f32[8,4], index: 3, kind: output, shape index: {}]
  %s4 = sld [smem:[#allocation0]]
  $region22: #{tpu_custom_call.1} parent=0
    _
  %s6 = ssub.s32 1, %s4
  %s7 = scalar_select 0, %s6, %s4
  // Predicated region
  $region2: #{tpu_custom_call.1} parent=0 // pred_check
    _
  $region3: #{tpu_custom_call.1} parent=0 // pred_check_branch
    %9 = sbr.rel (0) target = $region5
  $region4: #{tpu_custom_call.1} parent=0 // pred_region
    _
  $region5: #{tpu_custom_call.1} parent=0 // pred_fallthru
    _
  // Predicated region
  $region6: #{tpu_custom_call.1} parent=0 // pred_check
    _
  $region7: #{tpu_custom_call.1} parent=0 // pred_check_branch
    %11 = sbr.rel (0) target = $region9
  $region8: #{tpu_custom_call.1} parent=0 // pred_region
    _
  $region9: #{tpu_custom_call.1} parent=0 // pred_fallthru
    _
  // Predicated region
  $region10: #{tpu_custom_call.1} parent=0 // pred_check
    _
  $region11: #{tpu_custom_call.1} parent=0 // pred_check_branch
    %13 = sbr.rel (0) target = $region13
  $region12: #{tpu_custom_call.1} parent=0 // pred_region
    _
  $region13: #{tpu_custom_call.1} parent=0 // pred_fallthru
    _
  %v14 = vld [vmem:[%s0] sm:$0xff]
  %v15 = vld [vmem:[%s1] sm:$0xff]
  %v16 = vld [vmem:[%s1 + $0x8] sm:$0xff]
  %v17 = vld [vmem:[%s1 + $0x10] sm:$0xff]
  %v18 = vld [vmem:[%s1 + $0x18] sm:$0xff]
  %v19 = vld [vmem:[%s2] sm:$0x1]
  %v21 = vlaneseq
  %v22 = vshrl.u32 %v21, 7
  %v23 = vsub.s32 0, %v22
  %v24 = vrot.slane %v19, %v23
  %vm26 = vcmask 261120
  %v28 = vsel %vm26, %v14, 0
  %30 = vmatprep.subr.mxu0 0.0
  %31 = vmatpush1.msra.mxu0 %v15
  %32 = vmatprep.subr.mxu0 0.0
  %33 = vmatpush1.msra.mxu0 %v16
  %34 = vmatprep.subr.mxu0 0.0
  %35 = vmatpush1.msra.mxu0 %v17
  %36 = vmatprep.subr.mxu0 0.0
  %37 = vmatpush1.msra.mxu0 %v18
  %38 = vmatprep.subr.mxu0 0.0
  %39 = vmatpush1.msra.mxu0 0.0
  %40 = vmatprep.subr.mxu0 0.0
  %41 = vmatpush1.msra.mxu0 0.0
  %42 = vmatprep.subr.mxu0 0.0
  %43 = vmatpush1.msra.mxu0 0.0
  %44 = vmatprep.subr.mxu0 0.0
  %45 = vmatpush1.msra.mxu0 0.0
  %46 = vmatprep.subr.mxu0 0.0
  %47 = vmatpush1.msra.mxu0 0.0
  %48 = vmatprep.subr.mxu0 0.0
  %49 = vmatpush1.msra.mxu0 0.0
  %50 = vmatprep.subr.mxu0 0.0
  %51 = vmatpush1.msra.mxu0 0.0
  %52 = vmatprep.subr.mxu0 0.0
  %53 = vmatpush1.msra.mxu0 0.0
  %54 = vmatprep.subr.mxu0 0.0
  %55 = vmatpush1.msra.mxu0 0.0
  %56 = vmatprep.subr.mxu0 0.0
  %57 = vmatpush1.msra.mxu0 0.0
  %58 = vmatprep.subr.mxu0 0.0
  %59 = vmatpush1.msra.mxu0 0.0
  %60 = vmatprep.subr.mxu0 0.0
  %61 = vmatpush1.msra.mxu0 0.0
  %62 = vmatprep.subr.mxu0 0.0
  %63 = vmatpush1.msra.mxu0 0.0
  %64 = vmatprep.subr.mxu0 0.0
  %65 = vmatpush1.msra.mxu0 0.0
  %66 = vmatprep.subr.mxu0 0.0
  %67 = vmatpush1.msra.mxu0 0.0
  %68 = vmatprep.subr.mxu0 0.0
  %69 = vmatpush1.msra.mxu0 0.0
  %70 = vmatprep.subr.mxu0 0.0
  %71 = vmatpush1.msra.mxu0 0.0
  %72 = vmatprep.subr.mxu0 0.0
  %73 = vmatpush1.msra.mxu0 0.0
  %74 = vmatprep.subr.mxu0 0.0
  %75 = vmatpush1.msra.mxu0 0.0
  %76 = vmatprep.subr.mxu0 0.0
  %77 = vmatpush1.msra.mxu0 0.0
  %78 = vmatprep.subr.mxu0 0.0
  %79 = vmatpush1.msra.mxu0 0.0
  %80 = vmatprep.subr.mxu0 0.0
  %81 = vmatpush1.msra.mxu0 0.0
  %82 = vmatprep.subr.mxu0 0.0
  %83 = vmatpush1.msra.mxu0 0.0
  %84 = vmatprep.subr.mxu0 0.0
  %85 = vmatpush1.msra.mxu0 0.0
  %86 = vmatprep.subr.mxu0 0.0
  %87 = vmatpush1.msra.mxu0 0.0
  %88 = vmatprep.subr.mxu0 0.0
  %89 = vmatpush1.msra.mxu0 0.0
  %90 = vmatprep.subr.mxu0 0.0
  %91 = vmatpush1.msra.mxu0 0.0
  %92 = vmatprep.subr.mxu0 0.0
  %93 = vmatpush1.msra.mxu0 0.0
  %94 = vmatprep.mubr.f32.mxu0 0.0
  %95 = vmatmul.mubr.f32.gmra.mrb[0].mxu0 %v28
  %v96 = vpop.f32.mrb[0].mxu0
  %v97 = vadd.f32 %v24, %v96
  %v98 = vpop.f32.mrb[0].mxu0
  %99 = vdwg.mxu0
  %v100 = vsub.f32 0.0, %v97
  %v101 = vmul.f32 %v100, 1.442695
  %v102 = vpow.pop %v101
  %v103 = vadd.f32 %v102, 1.0
  %v104 = vrcp.pop %v103
  %vm105 = vcmask 31744
  %106 = vst.msk [vmem:[%s3] sm:$0xff] %vm105, %v104
  // Predicated region
  $region14: #{tpu_custom_call.1} parent=0 // pred_check
    _
  $region15: #{tpu_custom_call.1} parent=0 // pred_check_branch
    %108 = sbr.rel (0) target = $region17
  $region16: #{tpu_custom_call.1} parent=0 // pred_region
    _
  $region17: #{tpu_custom_call.1} parent=0 // pred_fallthru
    _
  // Predicated region
  $region18: #{tpu_custom_call.1} parent=0 // pred_check
    _
  $region19: #{tpu_custom_call.1} parent=0 // pred_check_branch
    %110 = sbr.rel (0) target = $region21
  $region20: #{tpu_custom_call.1} parent=0 // pred_region
    _
  $region21: #{tpu_custom_call.1} parent=0 // pred_fallthru
    _

</llo_original>
